<compile_context>
chip_gen: v7x
topology: tpu7x:2x2x1
jax: 0.10.0
libtpu: 0.0.40
codegen_flags: <defaults>
</compile_context>

<pallas_src>
import math

import jax
import jax.numpy as jnp
import numpy as np
from jax.experimental import pallas as pl
from jax.experimental.pallas import tpu as pltpu


# ----------------------------------------------------------------------------
# Zero-copy path: aliased identity (no HBM traffic at all).
# ----------------------------------------------------------------------------
def _alias_kernel(x_hbm_ref, o_hbm_ref):
    # Output buffer is aliased to the input buffer: the bits are already where
    # they need to be.  touch() only records a dependency so the aliased
    # output is considered produced; no load/store/DMA is emitted.
    del x_hbm_ref
    pltpu.touch(o_hbm_ref)


def _aliased_identity(x):
    return pl.pallas_call(
        _alias_kernel,
        out_shape=jax.ShapeDtypeStruct(x.shape, x.dtype),
        in_specs=[pl.BlockSpec(memory_space=pl.ANY)],
        out_specs=pl.BlockSpec(memory_space=pl.ANY),
        input_output_aliases={0: 0},
        cost_estimate=pl.CostEstimate(flops=0, transcendentals=0,
                                      bytes_accessed=0),
    )(x)


# ----------------------------------------------------------------------------
# Optional explicit-copy path: collapsed lane-dense slab, large tiles.
# ----------------------------------------------------------------------------
def _copy_kernel(x_ref, o_ref):
    # Identity copy of one lane-dense tile (full, unmasked vld/vst).
    o_ref[...] = x_ref[...]


_TARGET_BLOCK_BYTES = 4 << 20  # ~4 MiB/block: amortizes per-step overhead,
                               # 4 double-buffered blocks stay well under the
                               # 32 MiB scoped / 64 MiB physical VMEM on v7x.


def _sublane_step(dtype):
    # Dtype-aware sublane multiple: 8 for 4-byte, 16 for bf16, 32 for int8/fp8.
    itemsize = jnp.dtype(dtype).itemsize
    return max(8, 32 // itemsize)


def _pick_lanes(total):
    # Largest multiple-of-128 divisor of `total`, capped at 2048 lanes.
    for lanes in range(2048, 0, -128):
        if total % lanes == 0:
            return lanes
    return 128  # unreachable when total % 128 == 0


def _tiled_identity_copy(x):
    total = int(math.prod(x.shape))
    itemsize = jnp.dtype(x.dtype).itemsize
    lanes = _pick_lanes(total)
    rows = total // lanes

    sub = _sublane_step(x.dtype)
    max_rows = max(sub, (_TARGET_BLOCK_BYTES // (lanes * itemsize)) // sub * sub)
    tr = rows if rows <= max_rows else max_rows  # full dim or sublane multiple
    block_bytes = tr * lanes * itemsize

    flat2d = x.reshape(rows, lanes)  # metadata-only for contiguous input
    cost = pl.CostEstimate(flops=0, transcendentals=0,
                           bytes_accessed=2 * total * itemsize)
    return pl.pallas_call(
        _copy_kernel,
        out_shape=jax.ShapeDtypeStruct((rows, lanes), x.dtype),
        grid=(pl.cdiv(rows, tr),),
        in_specs=[pl.BlockSpec((tr, lanes), lambda r: (r, 0))],
        out_specs=pl.BlockSpec((tr, lanes), lambda r: (r, 0)),
        compiler_params=pltpu.CompilerParams(
            dimension_semantics=("parallel",),
            vmem_limit_bytes=min(32 << 20, 4 * block_bytes + (8 << 20))),
        cost_estimate=cost,
    )(flat2d)


# ----------------------------------------------------------------------------
# Wrapper: torch-style view semantics.
# ----------------------------------------------------------------------------
def _resolve_shape(shape, numel):
    """Mirror torch.view's single -1 inference."""
    shape = tuple(int(s) for s in shape)
    if -1 in shape:
        idx = shape.index(-1)
        rest = 1
        for i, s in enumerate(shape):
            if i != idx:
                rest *= s
        assert rest > 0 and numel % rest == 0, "cannot infer -1 dimension"
        shape = shape[:idx] + (numel // rest,) + shape[idx + 1:]
    assert math.prod(shape) == numel, (
        f"reshape: {numel} elements cannot be viewed as {shape}")
    return shape


def pallas_reshape(x, *shape, force_copy=False):
    """Equivalent of reshape(*shape)(x): x.view((x.size(0),) + shape)."""
    B = x.shape[0]
    n = int(math.prod(x.shape[1:])) if x.ndim > 1 else 1
    tgt = _resolve_shape(shape, n)
    out_shape = (B,) + tgt
    total = B * n

    y = None
    if not force_copy:
        # Zero-copy: aliased identity kernel, 0 bytes of HBM traffic.
        try:
            y = _aliased_identity(x)
        except Exception:
            y = None  # extremely defensive: fall back to the explicit copy
    if y is None:
        if total % 128 == 0:
            y = _tiled_identity_copy(x)
        else:
            # TODO(synk): a ragged-total explicit copy would need a u32-bitcast
            # bulk slab + tiny remainder tile; reshape is pure metadata, so we
            # skip the kernel rather than stage a <128-lane block through VMEM.
            y = x
    return y.reshape(out_shape)  # metadata-only shape change


if __name__ == "__main__":
    key = jax.random.PRNGKey(0)
    k1, k2 = jax.random.split(key)

    # Case 1: typical use — flatten a (B, C, H, W) feature map before a linear
    # layer: reshape(C*H*W).  (References computed up front.)
    x = jax.random.normal(k1, (2, 4, 16, 16), jnp.float32)
    ref1 = jnp.reshape(x, (2, 4 * 16 * 16))
    ref1b = jnp.reshape(x, (2, 16, 64))

    out1 = jax.block_until_ready(pallas_reshape(x, 4 * 16 * 16))
    np.testing.assert_array_equal(np.asarray(out1), np.asarray(ref1))

    # Case 1b: -1 inference and a non-flat target shape.
    out1b = jax.block_until_ready(pallas_reshape(x, 16, -1))
    np.testing.assert_array_equal(np.asarray(out1b), np.asarray(ref1b))

    # Case 1c: explicit-copy path (collapsed lane-dense slab, 1-D row grid).
    out1c = jax.block_until_ready(pallas_reshape(x, 4 * 16 * 16, force_copy=True))
    np.testing.assert_array_equal(np.asarray(out1c), np.asarray(ref1))

    # Case 2: ragged per-batch element count (105, not a multiple of 128).
    x2 = jax.random.normal(k2, (2, 3, 5, 7), jnp.float32)
    ref2 = jnp.reshape(x2, (2, 105))
    out2 = jax.block_until_ready(pallas_reshape(x2, 105))
    np.testing.assert_array_equal(np.asarray(out2), np.asarray(ref2))

    print("KERNEL_OK")
</pallas_src>

<mosaic_0001>
module attributes {stable_mosaic.version = 11 : i64} {
  func.func @_alias_kernel(%arg0: memref<2x4x16x16xf32, #tpu.memory_space<any>>, %arg1: memref<2x4x16x16xf32, #tpu.memory_space<any>>) attributes {dimension_semantics = [], scalar_prefetch = 0 : i64, scratch_operands = 0 : i64, tpu.core_type = #tpu.core_type<tc>} {
    return
  }
}

module attributes {stable_mosaic.version = 11 : i64} {
  func.func @_copy_kernel(%arg0: i32, %arg1: memref<1x2048xf32, #tpu.memory_space<vmem>>, %arg2: memref<1x2048xf32, #tpu.memory_space<vmem>>) attributes {dimension_semantics = [#tpu.dimension_semantics<parallel>], iteration_bounds = array<i64: 1>, scalar_prefetch = 0 : i64, scratch_operands = 0 : i64, tpu.core_type = #tpu.core_type<tc>, window_params = [{transform_indices = @transform_0, window_bounds = array<i64: 1, 2048>}, {transform_indices = @transform_1, window_bounds = array<i64: 1, 2048>}]} {
    %c0 = arith.constant 0 : index
    %c0_0 = arith.constant 0 : index
    %0 = vector.load %arg1[%c0, %c0_0] : memref<1x2048xf32, #tpu.memory_space<vmem>>, vector<1x2048xf32>
    %c0_1 = arith.constant 0 : index
    %c0_2 = arith.constant 0 : index
    %1 = vector.load %arg2[%c0_1, %c0_2] : memref<1x2048xf32, #tpu.memory_space<vmem>>, vector<1x2048xf32>
    tpu.vector_store %arg2[%c0_1, %c0_2], %0 {strides = array<i32>} : memref<1x2048xf32, #tpu.memory_space<vmem>>, vector<1x2048xf32>,
    return
  }
  func.func @transform_0(%arg0: i32) -> (i32, i32) {
    %c0_i32 = arith.constant 0 : i32
    %c0_i32_0 = arith.constant 0 : i32
    return %arg0, %c0_i32 : i32, i32
  }
  func.func @transform_1(%arg0: i32) -> (i32, i32) {
    %c0_i32 = arith.constant 0 : i32
    %c0_i32_0 = arith.constant 0 : i32
    return %arg0, %c0_i32 : i32, i32
  }
}

</mosaic_0001>

<llo_original>
// kernel: tpu_custom_call.1
$region0: #{tpu_custom_call.1}
  #allocation0 [shape = 'u32[]', space=smem, size = 0x4, offset = 0x4, fixed_abs, tag = 'smem constant byte address 0x4 - core index']
  #allocation1 [shape = 'u32[144,128]{1,0:T(1,128)}', space=vmem, size = 0x12000, scoped, tag = 'internal scratch']
  %s0 = inlined_call_operand.hbm [shape: f32[2,4,16,16], index: 0, kind: input, shape index: {}, may-alias: {0,1}]
  %s1 = inlined_call_operand.hbm [shape: f32[2,4,16,16], index: 1, kind: output, shape index: {}, may-alias: {0,1}]
  %s2 = sld [smem:[#allocation0]]
  $region2: #{tpu_custom_call.1} parent=0
    _
  %s4 = ssub.s32 1, %s2
  %s5 = scalar_select 0, %s4, %s2

// kernel: tpu_custom_call.1
$region0: #{tpu_custom_call.1}
  #allocation0 [shape = 'u32[]', space=smem, size = 0x4, offset = 0x4, fixed_abs, tag = 'smem constant byte address 0x4 - core index']
  #allocation1 [shape = 'u32[144,128]{1,0:T(1,128)}', space=vmem, size = 0x12000, scoped, tag = 'internal scratch']
  %s0 = inlined_call_operand.hbm [shape: f32[1,2048], index: 0, kind: input, shape index: {}]
  %s1 = inlined_call_operand.hbm [shape: f32[1,2048], index: 1, kind: output, shape index: {}]
  %s2 = sld [smem:[#allocation0]]
  $region18: #{tpu_custom_call.1} parent=0
    _
  %s4 = ssub.s32 1, %s2
  %s5 = scalar_select 0, %s4, %s2
  $region1: #{tpu_custom_call.1} parent=0
    #allocation2 [shape = 'u8[8192]{0}', space=vmem, size = 0x2000, scoped, tag = 'input window, operand 0, single buffered']
    #allocation3 [shape = 's32[1]{0}', space=sflag, size = 0x4, scoped, tag = 'scoped memory for tpu_custom_call.1']
    #allocation4 [shape = 's32[1]{0}', space=sflag, size = 0x4, scoped, tag = 'scoped memory for tpu_custom_call.1']
    #allocation5 [shape = 'u8[8192]{0}', space=vmem, size = 0x2000, scoped, tag = 'output window, operand 0, single buffered']
    %6 = vsyncpa [#allocation3], 0
    %7 = vsyncpa [#allocation4], 0
    // Predicated region
    $region2: #{tpu_custom_call.1} parent=1 // pred_check
      _
    $region3: #{tpu_custom_call.1} parent=1 // pred_check_branch
      %9 = sbr.rel (0) target = $region5
    $region4: #{tpu_custom_call.1} parent=1 // pred_region
      %s11 = ssub.s32 256, 256
      %12 = vsyncadd [#allocation3], %s11
      %s14 = sshll.u32 [#allocation2], 4
      %s15 = int_to_ptr.vmem [resolvable:$true] %s14
      %17 = dma.hbm_to_vmem [thread:$0]  %s0, 256, %s15, [#allocation3]
    $region5: #{tpu_custom_call.1} parent=1 // pred_fallthru
      _
    // Predicated region
    $region6: #{tpu_custom_call.1} parent=1 // pred_check
      _
    $region7: #{tpu_custom_call.1} parent=1 // pred_check_branch
      %19 = sbr.rel (0) target = $region9
    $region8: #{tpu_custom_call.1} parent=1 // pred_region
      %20 = dma.done [#allocation3], 256
    $region9: #{tpu_custom_call.1} parent=1 // pred_fallthru
      _
    %v21 = vld [vmem:[#allocation2] sm:$0xff]
    %v22 = vld [vmem:[#allocation2 + $0x8] sm:$0xff]
    %23 = vst [vmem:[#allocation5] sm:$0xff] %v21
    %24 = vst [vmem:[#allocation5 + $0x8] sm:$0xff] %v22
    // Predicated region
    $region10: #{tpu_custom_call.1} parent=1 // pred_check
      _
    $region11: #{tpu_custom_call.1} parent=1 // pred_check_branch
      %26 = sbr.rel (0) target = $region13
    $region12: #{tpu_custom_call.1} parent=1 // pred_region
      %s28 = ssub.s32 256, 256
      %29 = vsyncadd [#allocation4], %s28
      %s31 = sshll.u32 [#allocation5], 4
      %s32 = int_to_ptr.vmem [resolvable:$true] %s31
      %34 = dma.vmem_to_hbm [thread:$0]  %s32, 256, %s1, [#allocation4]
    $region13: #{tpu_custom_call.1} parent=1 // pred_fallthru
      _
    // Predicated region
    $region14: #{tpu_custom_call.1} parent=1 // pred_check
      _
    $region15: #{tpu_custom_call.1} parent=1 // pred_check_branch
      %36 = sbr.rel (0) target = $region17
    $region16: #{tpu_custom_call.1} parent=1 // pred_region
      %37 = dma.done [#allocation4], 256
    $region17: #{tpu_custom_call.1} parent=1 // pred_fallthru
      _
    %38 = vsyncpa [#allocation3], 1
    %39 = vsyncpa [#allocation4], 1

</llo_original>
